<compile_context>
chip_gen: v7x
topology: tpu7x:2x2x1
jax: 0.10.0
libtpu: 0.0.40
codegen_flags: <defaults>
</compile_context>

<pallas_src>
import jax
import jax.numpy as jnp
from jax.experimental import pallas as pl
from jax.experimental.pallas import tpu as pltpu

_LANE_CAP = 1024                 # preferred lane-dense last dim (multiple of 128)
_TARGET_BLOCK_BYTES = 4 << 20    # ~4 MiB per buffer
_VMEM_LIMIT_BYTES = 32 << 20     # explicit scoped-VMEM budget (safe on v5e/v6e/v7x)


def _h_sigmoid_kernel(x_ref, o_ref):
    # relu6(x + 3) * (1/6), computed in f32, cast back at the store.
    x = x_ref[...].astype(jnp.float32)
    y = jnp.clip(x + 3.0, 0.0, 6.0) * (1.0 / 6.0)
    o_ref[...] = y.astype(o_ref.dtype)


def _pick_lane(total):
    """Largest multiple of 128 (<= _LANE_CAP) dividing `total`, else None."""
    for m in range(_LANE_CAP // 128, 0, -1):
        lane = 128 * m
        if total % lane == 0:
            return lane
    return None


def _pick_rows_tile(rows, lane, elem_bytes):
    """Row tile: large (amortize ~0.35us/step overhead) but >= 2 blocks when
    rows allow, so v7x shards across both TensorCores and DMA overlaps."""
    if rows <= 16:
        return rows  # single full-extent block (tiny input)
    max_tr = max(8, (_TARGET_BLOCK_BYTES // (lane * elem_bytes)) // 8 * 8)
    tr = min(rows, max_tr)
    tr = (tr // 8) * 8
    if tr >= rows:  # would collapse to one block -> split roughly in two
        tr = max(8, (rows // 2) // 8 * 8)
    grid_r = pl.cdiv(rows, tr)
    # Rebalance so the last (ragged) block isn't pathologically small.
    tr = min(tr, ((pl.cdiv(rows, grid_r) + 7) // 8) * 8)
    return tr


def h_sigmoid(x, *, donate=False):
    """Elementwise hard-sigmoid: relu6(x + 3) / 6. Any input rank/layout.

    donate=True adds input_output_aliases={0: 0}; only use when the caller
    actually donates x (otherwise XLA inserts a defensive copy).
    """
    orig_shape = x.shape
    orig_dtype = x.dtype
    total = x.size
    if total == 0:
        return x

    elem_bytes = jnp.dtype(orig_dtype).itemsize

    lane = _pick_lane(total)
    if lane is None:
        # Ragged total (not a multiple of 128): keep the original minor dim as
        # lanes; full-extent last block dim satisfies the (8,128) rule and we
        # avoid any pad/slice HBM passes.
        lane = orig_shape[-1] if (x.ndim >= 1 and orig_shape[-1] > 0) else total
        if lane * 8 * elem_bytes > 2 * _TARGET_BLOCK_BYTES:
            # TODO(synk): huge non-128-multiple minor dim would need an
            # in-kernel masked lane tail; fall back to plain jnp (XLA fuses it).
            return (jnp.clip(x.astype(jnp.float32) + 3.0, 0.0, 6.0)
                    * (1.0 / 6.0)).astype(orig_dtype)

    rows = total // lane
    x2d = x.reshape(rows, lane)  # contiguous row-major reshape: bitcast, no HBM pass

    tr = _pick_rows_tile(rows, lane, elem_bytes)
    grid_r = pl.cdiv(rows, tr)

    out = pl.pallas_call(
        _h_sigmoid_kernel,
        out_shape=jax.ShapeDtypeStruct((rows, lane), orig_dtype),
        grid=(grid_r,),
        in_specs=[pl.BlockSpec((tr, lane), lambda i: (i, 0))],
        out_specs=pl.BlockSpec((tr, lane), lambda i: (i, 0)),
        input_output_aliases={0: 0} if donate else {},
        compiler_params=pltpu.CompilerParams(
            dimension_semantics=("parallel",),
            vmem_limit_bytes=_VMEM_LIMIT_BYTES,
        ),
    )(x2d)

    return out.reshape(orig_shape)


def _ref(x):
    return (jnp.clip(x.astype(jnp.float32) + 3.0, 0.0, 6.0) / 6.0).astype(x.dtype)


if __name__ == "__main__":
    key = jax.random.PRNGKey(0)

    # NCHW, matching the PyTorch module's expected conv-style input.
    x = jax.random.normal(key, (2, 4, 16, 16), dtype=jnp.float32) * 4.0
    y = h_sigmoid(x)
    jax.block_until_ready(y)
    assert y.shape == x.shape and y.dtype == x.dtype
    assert jnp.allclose(y, _ref(x), atol=1e-6), "mismatch vs reference (aligned)"

    # Exercise the ragged (non-multiple-of-128) path as well.
    x2 = jax.random.normal(jax.random.PRNGKey(1), (3, 5, 7), dtype=jnp.float32) * 4.0
    y2 = h_sigmoid(x2)
    jax.block_until_ready(y2)
    assert y2.shape == x2.shape and y2.dtype == x2.dtype
    assert jnp.allclose(y2, _ref(x2), atol=1e-6), "mismatch vs reference (ragged)"

    print("KERNEL_OK")
</pallas_src>

<mosaic_0001>
module attributes {stable_mosaic.version = 11 : i64} {
  func.func @_h_sigmoid_kernel(%arg0: i32, %arg1: memref<2x1024xf32, #tpu.memory_space<vmem>>, %arg2: memref<2x1024xf32, #tpu.memory_space<vmem>>) attributes {dimension_semantics = [#tpu.dimension_semantics<parallel>], iteration_bounds = array<i64: 1>, scalar_prefetch = 0 : i64, scratch_operands = 0 : i64, tpu.core_type = #tpu.core_type<tc>, window_params = [{transform_indices = @transform_0, window_bounds = array<i64: 2, 1024>}, {transform_indices = @transform_1, window_bounds = array<i64: 2, 1024>}]} {
    %c0 = arith.constant 0 : index
    %c0_0 = arith.constant 0 : index
    %0 = vector.load %arg1[%c0, %c0_0] : memref<2x1024xf32, #tpu.memory_space<vmem>>, vector<2x1024xf32>
    %cst = arith.constant 3.000000e+00 : f32
    %1 = vector.broadcast %cst : f32 to vector<2x1024xf32>
    %2 = arith.addf %0, %1 : vector<2x1024xf32>
    %cst_1 = arith.constant 0.000000e+00 : f32
    %cst_2 = arith.constant 6.000000e+00 : f32
    %3 = vector.broadcast %cst_1 : f32 to vector<2x1024xf32>
    %4 = arith.maximumf %3, %2 : vector<2x1024xf32>
    %5 = vector.broadcast %cst_2 : f32 to vector<2x1024xf32>
    %6 = arith.minimumf %5, %4 : vector<2x1024xf32>
    %cst_3 = arith.constant 0.166666672 : f32
    %7 = vector.broadcast %cst_3 : f32 to vector<2x1024xf32>
    %8 = arith.mulf %6, %7 : vector<2x1024xf32>
    %c0_4 = arith.constant 0 : index
    %c0_5 = arith.constant 0 : index
    %9 = vector.load %arg2[%c0_4, %c0_5] : memref<2x1024xf32, #tpu.memory_space<vmem>>, vector<2x1024xf32>
    tpu.vector_store %arg2[%c0_4, %c0_5], %8 {strides = array<i32>} : memref<2x1024xf32, #tpu.memory_space<vmem>>, vector<2x1024xf32>,
    return
  }
  func.func @transform_0(%arg0: i32) -> (i32, i32) {
    %c0_i32 = arith.constant 0 : i32
    %c0_i32_0 = arith.constant 0 : i32
    return %arg0, %c0_i32 : i32, i32
  }
  func.func @transform_1(%arg0: i32) -> (i32, i32) {
    %c0_i32 = arith.constant 0 : i32
    %c0_i32_0 = arith.constant 0 : i32
    return %arg0, %c0_i32 : i32, i32
  }
}

</mosaic_0001>

<llo_original>
// kernel: tpu_custom_call.1
$region0: #{tpu_custom_call.1}
  #allocation0 [shape = 'u32[]', space=smem, size = 0x4, offset = 0x4, fixed_abs, tag = 'smem constant byte address 0x4 - core index']
  #allocation1 [shape = 'u32[144,128]{1,0:T(1,128)}', space=vmem, size = 0x12000, scoped, tag = 'internal scratch']
  %s0 = inlined_call_operand.hbm [shape: f32[2,1024], index: 0, kind: input, shape index: {}]
  %s1 = inlined_call_operand.hbm [shape: f32[2,1024], index: 1, kind: output, shape index: {}]
  %s2 = sld [smem:[#allocation0]]
  $region18: #{tpu_custom_call.1} parent=0
    _
  %s4 = ssub.s32 1, %s2
  %s5 = scalar_select 0, %s4, %s2
  $region1: #{tpu_custom_call.1} parent=0
    #allocation2 [shape = 'u8[8192]{0}', space=vmem, size = 0x2000, scoped, tag = 'input window, operand 0, single buffered']
    #allocation3 [shape = 's32[1]{0}', space=sflag, size = 0x4, scoped, tag = 'scoped memory for tpu_custom_call.1']
    #allocation4 [shape = 's32[1]{0}', space=sflag, size = 0x4, scoped, tag = 'scoped memory for tpu_custom_call.1']
    #allocation5 [shape = 'u8[8192]{0}', space=vmem, size = 0x2000, scoped, tag = 'output window, operand 0, single buffered']
    %6 = vsyncpa [#allocation3], 0
    %7 = vsyncpa [#allocation4], 0
    // Predicated region
    $region2: #{tpu_custom_call.1} parent=1 // pred_check
      _
    $region3: #{tpu_custom_call.1} parent=1 // pred_check_branch
      %9 = sbr.rel (0) target = $region5
    $region4: #{tpu_custom_call.1} parent=1 // pred_region
      %s11 = ssub.s32 256, 256
      %12 = vsyncadd [#allocation3], %s11
      %s14 = sshll.u32 [#allocation2], 4
      %s15 = int_to_ptr.vmem [resolvable:$true] %s14
      %17 = dma.hbm_to_vmem [thread:$0]  %s0, 256, %s15, [#allocation3]
    $region5: #{tpu_custom_call.1} parent=1 // pred_fallthru
      _
    // Predicated region
    $region6: #{tpu_custom_call.1} parent=1 // pred_check
      _
    $region7: #{tpu_custom_call.1} parent=1 // pred_check_branch
      %19 = sbr.rel (0) target = $region9
    $region8: #{tpu_custom_call.1} parent=1 // pred_region
      %20 = dma.done [#allocation3], 256
    $region9: #{tpu_custom_call.1} parent=1 // pred_fallthru
      _
    %v21 = vld [vmem:[#allocation2] sm:$0xff]
    %v22 = vld [vmem:[#allocation2 + $0x8] sm:$0xff]
    %v23 = vadd.f32 %v21, 3.0
    %v24 = vadd.f32 %v22, 3.0
    %v25 = vmax.f32 %v23, 0.0
    %v26 = vmax.f32 %v24, 0.0
    %v27 = vmin.f32 %v25, 6.0
    %v28 = vmin.f32 %v26, 6.0
    %v29 = vmul.f32 %v27, 0.16666667
    %v30 = vmul.f32 %v28, 0.16666667
    %31 = vst [vmem:[#allocation5] sm:$0xff] %v29
    %32 = vst [vmem:[#allocation5 + $0x8] sm:$0xff] %v30
    // Predicated region
    $region10: #{tpu_custom_call.1} parent=1 // pred_check
      _
    $region11: #{tpu_custom_call.1} parent=1 // pred_check_branch
      %34 = sbr.rel (0) target = $region13
    $region12: #{tpu_custom_call.1} parent=1 // pred_region
      %s36 = ssub.s32 256, 256
      %37 = vsyncadd [#allocation4], %s36
      %s39 = sshll.u32 [#allocation5], 4
      %s40 = int_to_ptr.vmem [resolvable:$true] %s39
      %42 = dma.vmem_to_hbm [thread:$0]  %s40, 256, %s1, [#allocation4]
    $region13: #{tpu_custom_call.1} parent=1 // pred_fallthru
      _
    // Predicated region
    $region14: #{tpu_custom_call.1} parent=1 // pred_check
      _
    $region15: #{tpu_custom_call.1} parent=1 // pred_check_branch
      %44 = sbr.rel (0) target = $region17
    $region16: #{tpu_custom_call.1} parent=1 // pred_region
      %45 = dma.done [#allocation4], 256
    $region17: #{tpu_custom_call.1} parent=1 // pred_fallthru
      _
    %46 = vsyncpa [#allocation3], 1
    %47 = vsyncpa [#allocation4], 1

</llo_original>
